<compile_context>
chip_gen: v7x
topology: tpu7x:2x2x1
jax: 0.10.0
libtpu: 0.0.40
codegen_flags: <defaults>
</compile_context>

<pallas_src>
import functools

import jax
import jax.numpy as jnp
from jax import lax
from jax.experimental import pallas as pl
from jax.experimental.pallas import tpu as pltpu


def _round_up(v, m):
    return (v + m - 1) // m * m


# --------------------------------------------------------------------------------------
# Pallas kernel
# --------------------------------------------------------------------------------------
def _gat_edge_avg_kernel(h_ref, w_ref, b_ref, mtgt_ref, o_ref, *, d_o, eps):
    """One (N-tile, E-tile) step of GATLayerEdgeAverage.

    h_ref    : (te, 2*d_i)  edge features [x[src] | x[tgt]]        (compute dtype)
    w_ref    : (2*d_i, C)   fused weights [Wf | Ww | 0-pad], C = round_up(d_o+1, 128)
    b_ref    : (1, C)       fused bias    [bf | bw | 0]            (f32)
    mtgt_ref : (tn, te)     Mtgt tile                              (compute dtype)
    o_ref    : (tn, C)      resident f32 accumulator / output tile:
                            cols [0, d_o) -> Mtgt @ (y*a),  col d_o -> Mtgt @ a.
    """
    k = pl.program_id(1)

    @pl.when(k == 0)
    def _init():
        o_ref[...] = jnp.zeros_like(o_ref)

    # Fused projection: one lane-dense MXU pass  z = h @ [Wf | Ww | 0] + [bf | bw | 0].
    z = jnp.dot(h_ref[...], w_ref[...], preferred_element_type=jnp.float32) + b_ref[...]

    col = lax.broadcasted_iota(jnp.int32, z.shape, 1)
    y = jnp.where(col < d_o, jnp.maximum(z, 0.0), 0.0)     # relu(f(h)) on feature lanes
    a_col = jnp.where(col == d_o, z, 0.0)                  # a = w(h) lives in lane d_o
    a = jnp.sum(a_col, axis=1, keepdims=True)              # (te, 1)

    # Fused aggregation: one (tn, te) @ (te, C) MXU pass over [y*a | a | 0-pad].
    agg_in = (y * a + a_col).astype(mtgt_ref.dtype)
    o_ref[...] += jnp.dot(mtgt_ref[...], agg_in, preferred_element_type=jnp.float32)

    @pl.when(k == pl.num_programs(1) - 1)
    def _finalize():
        acc = o_ref[...]
        ocol = lax.broadcasted_iota(jnp.int32, acc.shape, 1)
        a_sum = jnp.sum(jnp.where(ocol == d_o, acc, 0.0), axis=1, keepdims=True) + eps
        o_ref[...] = acc * pl.reciprocal(a_sum, approx=True)


# --------------------------------------------------------------------------------------
# Wrapper
# --------------------------------------------------------------------------------------
def gat_layer_edge_average(x, adj, src, tgt, msrc, mtgt, wf, bf, ww, bw, *,
                           eps=1e-6, compute_dtype=jnp.bfloat16, tn=128, te=256):
    """Forward of GATLayerEdgeAverage. Weights stored (in, out): f(h) = h @ wf + bf."""
    del adj, msrc  # unused by the reference forward as well
    n, d_i = x.shape
    e = src.shape[0]
    d_o = wf.shape[1]
    din2 = 2 * d_i

    # Edge-feature gather + concat stays in JAX.
    # TODO(synk): gather x[src]/x[tgt] rows in-kernel (scalar-prefetched src/tgt + DMA
    # gather) to avoid materialising the (E, 2*d_i) matrix in HBM for large E.
    h = jnp.concatenate([jnp.take(x, src, axis=0), jnp.take(x, tgt, axis=0)], axis=1)

    # Fuse the f- and w- projections into one lane-dense (pad-to-128) weight block.
    c = _round_up(d_o + 1, 128)
    w_cat = (jnp.zeros((din2, c), jnp.float32)
             .at[:, :d_o].set(wf.astype(jnp.float32))
             .at[:, d_o:d_o + 1].set(ww.astype(jnp.float32)))
    b_cat = (jnp.zeros((1, c), jnp.float32)
             .at[:, :d_o].set(bf.astype(jnp.float32))
             .at[:, d_o:d_o + 1].set(bw.astype(jnp.float32)))

    # Tile sizes: te multiple of 128 (lane axis of the Mtgt tile), tn multiple of 8.
    # Defaults (128, 256) keep double-buffered tiles tiny, safe on v5e/v6e/v7x VMEM.
    tn = min(tn, _round_up(n, 8))
    te = min(te, _round_up(e, 128))
    n_pad = _round_up(n, tn)
    e_pad = _round_up(e, te)

    # Zero-padding: padded Mtgt columns/rows are exactly 0, so padded edges/nodes
    # contribute nothing to the accumulations.
    h_p = jnp.zeros((e_pad, din2), compute_dtype).at[:e, :].set(h.astype(compute_dtype))
    m_p = jnp.zeros((n_pad, e_pad), compute_dtype).at[:n, :e].set(mtgt.astype(compute_dtype))
    w_cat = w_cat.astype(compute_dtype)  # bias stays f32 (added post-matmul in f32)

    grid = (n_pad // tn, e_pad // te)
    kernel = functools.partial(_gat_edge_avg_kernel, d_o=d_o, eps=eps)

    out = pl.pallas_call(
        kernel,
        out_shape=jax.ShapeDtypeStruct((n_pad, c), jnp.float32),
        grid_spec=pltpu.PrefetchScalarGridSpec(
            num_scalar_prefetch=0,
            grid=grid,
            in_specs=[
                pl.BlockSpec((te, din2), lambda i, k: (k, 0)),   # h tile (E axis)
                pl.BlockSpec((din2, c), lambda i, k: (0, 0)),    # fused weights (resident)
                pl.BlockSpec((1, c), lambda i, k: (0, 0)),       # fused bias (resident)
                pl.BlockSpec((tn, te), lambda i, k: (i, k)),     # Mtgt tile
            ],
            out_specs=pl.BlockSpec((tn, c), lambda i, k: (i, 0)),
        ),
        compiler_params=pltpu.CompilerParams(
            dimension_semantics=("parallel", "arbitrary"),  # N split across TCs on v7x
            vmem_limit_bytes=32 * 1024 * 1024,
        ),
    )(h_p, w_cat, b_cat, m_p)

    return out[:n, :d_o]


# --------------------------------------------------------------------------------------
# Pure-JAX reference (compute_dtype=bfloat16 mirrors the kernel's MXU-input casts)
# --------------------------------------------------------------------------------------
def _reference_forward(x, adj, src, tgt, msrc, mtgt, wf, bf, ww, bw, *,
                       eps=1e-6, compute_dtype=jnp.float32):
    del adj, msrc
    cd = compute_dtype
    h = jnp.concatenate([x[src], x[tgt]], axis=1).astype(cd)
    y = jnp.maximum(jnp.dot(h, wf.astype(cd), preferred_element_type=jnp.float32) + bf, 0.0)
    a = jnp.dot(h, ww.astype(cd), preferred_element_type=jnp.float32) + bw
    m = mtgt.astype(cd)
    num = jnp.dot(m, (y * a).astype(cd), preferred_element_type=jnp.float32)
    a_sum = jnp.dot(m, a.astype(cd), preferred_element_type=jnp.float32) + eps
    return num / a_sum


# --------------------------------------------------------------------------------------
if __name__ == "__main__":
    key = jax.random.PRNGKey(0)
    N, E, D_I, D_O = 200, 600, 8, 32   # pads to N_pad=256, E_pad=768 -> grid (2, 3)

    k_x, k_src, k_tgt, k_wf, k_bf, k_ww = jax.random.split(key, 6)
    x = jax.random.normal(k_x, (N, D_I), jnp.float32)
    src = jax.random.randint(k_src, (E,), 0, N)
    tgt = jax.random.randint(k_tgt, (E,), 0, N)

    adj = jnp.zeros((N, N), jnp.float32).at[src, tgt].set(1.0)
    msrc = jnp.zeros((N, E), jnp.float32).at[src, jnp.arange(E)].set(1.0)
    mtgt = jnp.zeros((N, E), jnp.float32).at[tgt, jnp.arange(E)].set(1.0)

    # Parameters stored as (in, out); xavier-uniform weights as in the module.
    def xavier(k, fi, fo):
        b = (6.0 / (fi + fo)) ** 0.5
        return jax.random.uniform(k, (fi, fo), jnp.float32, -b, b)

    wf = xavier(k_wf, 2 * D_I, D_O)
    bf = jax.random.uniform(k_bf, (1, D_O), jnp.float32,
                            -1.0 / (2 * D_I) ** 0.5, 1.0 / (2 * D_I) ** 0.5)
    # Test-data conditioning only: scale ww and use a positive attention bias so that
    # Mtgt @ a stays well away from 0 (the layer itself — like the PyTorch module —
    # is numerically unstable when the per-node attention sum cancels to ~0).
    ww = 0.2 * xavier(k_ww, 2 * D_I, 1)
    bw = jnp.full((1, 1), 1.5, jnp.float32)

    args = (x, adj, src, tgt, msrc, mtgt, wf, bf, ww, bw)

    # f32 MXU path: exact module semantics.
    out_f32 = jax.block_until_ready(
        gat_layer_edge_average(*args, compute_dtype=jnp.float32))
    assert out_f32.shape == (N, D_O)
    ref_f32 = _reference_forward(*args, compute_dtype=jnp.float32)
    assert jnp.allclose(out_f32, ref_f32, rtol=5e-3, atol=5e-3), "f32 path mismatch"

    # bf16 MXU path (default): compare against a reference with identical input casts.
    out_bf16 = jax.block_until_ready(gat_layer_edge_average(*args))
    assert out_bf16.shape == (N, D_O)
    ref_bf16 = _reference_forward(*args, compute_dtype=jnp.bfloat16)
    assert jnp.allclose(out_bf16, ref_bf16, rtol=5e-3, atol=5e-3), "bf16 path mismatch"

    print("KERNEL_OK")
</pallas_src>

<mosaic_0001>
module attributes {stable_mosaic.version = 11 : i64} {
  func.func @_gat_edge_avg_kernel(%arg0: i32, %arg1: i32, %arg2: memref<256x16xf32, #tpu.memory_space<vmem>>, %arg3: memref<16x128xf32, #tpu.memory_space<vmem>>, %arg4: memref<1x128xf32, #tpu.memory_space<vmem>>, %arg5: memref<128x256xf32, #tpu.memory_space<vmem>>, %arg6: memref<128x128xf32, #tpu.memory_space<vmem>>) attributes {dimension_semantics = [#tpu.dimension_semantics<parallel>, #tpu.dimension_semantics<arbitrary>], iteration_bounds = array<i64: 2, 3>, scalar_prefetch = 0 : i64, scratch_operands = 0 : i64, tpu.core_type = #tpu.core_type<tc>, window_params = [{transform_indices = @transform_0, window_bounds = array<i64: 256, 16>}, {pipeline_mode = #tpu.pipeline_mode<synchronous>, transform_indices = @transform_1, window_bounds = array<i64: 16, 128>}, {pipeline_mode = #tpu.pipeline_mode<synchronous>, transform_indices = @transform_2, window_bounds = array<i64: 1, 128>}, {transform_indices = @transform_3, window_bounds = array<i64: 128, 256>}, {transform_indices = @transform_4, window_bounds = array<i64: 128, 128>}]} {
    %c0_i32 = arith.constant 0 : i32
    %0 = arith.cmpi eq, %arg1, %c0_i32 : i32
    %1 = arith.extui %0 : i1 to i32
    %c0_i32_0 = arith.constant 0 : i32
    %2 = arith.cmpi ne, %1, %c0_i32_0 : i32
    scf.if %2 {
      %cst_19 = arith.constant 0.000000e+00 : f32
      %33 = vector.broadcast %cst_19 : f32 to vector<128x128xf32>
      %c0_20 = arith.constant 0 : index
      %c0_21 = arith.constant 0 : index
      %34 = vector.load %arg6[%c0_20, %c0_21] : memref<128x128xf32, #tpu.memory_space<vmem>>, vector<128x128xf32>
      tpu.vector_store %arg6[%c0_20, %c0_21], %33 {strides = array<i32>} : memref<128x128xf32, #tpu.memory_space<vmem>>, vector<128x128xf32>,
    } else {
    }
    %c0 = arith.constant 0 : index
    %c0_1 = arith.constant 0 : index
    %3 = vector.load %arg2[%c0, %c0_1] : memref<256x16xf32, #tpu.memory_space<vmem>>, vector<256x16xf32>
    %c0_2 = arith.constant 0 : index
    %c0_3 = arith.constant 0 : index
    %4 = vector.load %arg3[%c0_2, %c0_3] : memref<16x128xf32, #tpu.memory_space<vmem>>, vector<16x128xf32>
    %cst = arith.constant dense<0.000000e+00> : vector<256x128xf32>
    %5 = tpu.matmul %3, %4, %cst {dimension_numbers = #tpu.dot_dimension_numbers<[1], [0], [0], [1], [0, 0, 1, 1], [], []>} : vector<256x16xf32>, vector<16x128xf32>, vector<256x128xf32> -> vector<256x128xf32>
    %c0_4 = arith.constant 0 : index
    %c0_5 = arith.constant 0 : index
    %6 = vector.load %arg4[%c0_4, %c0_5] : memref<1x128xf32, #tpu.memory_space<vmem>>, vector<1x128xf32>
    %7 = vector.broadcast %6 : vector<1x128xf32> to vector<256x128xf32>
    %8 = arith.addf %5, %7 : vector<256x128xf32>
    %9 = tpu.iota {dimensions = array<i32: 1>} : vector<256x128xi32>
    %c32_i32 = arith.constant 32 : i32
    %10 = vector.broadcast %c32_i32 : i32 to vector<256x128xi32>
    %11 = arith.cmpi slt, %9, %10 : vector<256x128xi32>
    %cst_6 = arith.constant 0.000000e+00 : f32
    %12 = vector.broadcast %cst_6 : f32 to vector<256x128xf32>
    %13 = arith.maximumf %8, %12 : vector<256x128xf32>
    %cst_7 = arith.constant 0.000000e+00 : f32
    %14 = vector.broadcast %cst_7 : f32 to vector<256x128xf32>
    %15 = arith.select %11, %13, %14 : vector<256x128xi1>, vector<256x128xf32>
    %c32_i32_8 = arith.constant 32 : i32
    %16 = vector.broadcast %c32_i32_8 : i32 to vector<256x128xi32>
    %17 = arith.cmpi eq, %9, %16 : vector<256x128xi32>
    %cst_9 = arith.constant 0.000000e+00 : f32
    %18 = vector.broadcast %cst_9 : f32 to vector<256x128xf32>
    %19 = arith.select %17, %8, %18 : vector<256x128xi1>, vector<256x128xf32>
    %cst_10 = arith.constant dense<0.000000e+00> : vector<256xf32>
    %20 = vector.multi_reduction <add>, %19, %cst_10 [1] : vector<256x128xf32> to vector<256xf32>
    %21 = vector.shape_cast %20 : vector<256xf32> to vector<256x1xf32>
    %22 = vector.broadcast %21 : vector<256x1xf32> to vector<256x128xf32>
    %23 = arith.mulf %15, %22 : vector<256x128xf32>
    %24 = arith.addf %23, %19 : vector<256x128xf32>
    %c0_11 = arith.constant 0 : index
    %c0_12 = arith.constant 0 : index
    %25 = vector.load %arg6[%c0_11, %c0_12] : memref<128x128xf32, #tpu.memory_space<vmem>>, vector<128x128xf32>
    %c0_13 = arith.constant 0 : index
    %c0_14 = arith.constant 0 : index
    %26 = vector.load %arg5[%c0_13, %c0_14] : memref<128x256xf32, #tpu.memory_space<vmem>>, vector<128x256xf32>
    %cst_15 = arith.constant dense<0.000000e+00> : vector<128x128xf32>
    %27 = tpu.matmul %26, %24, %cst_15 {dimension_numbers = #tpu.dot_dimension_numbers<[1], [0], [0], [1], [0, 0, 1, 1], [], []>} : vector<128x256xf32>, vector<256x128xf32>, vector<128x128xf32> -> vector<128x128xf32>
    %28 = arith.addf %25, %27 : vector<128x128xf32>
    %c0_16 = arith.constant 0 : index
    %c0_17 = arith.constant 0 : index
    %29 = vector.load %arg6[%c0_16, %c0_17] : memref<128x128xf32, #tpu.memory_space<vmem>>, vector<128x128xf32>
    tpu.vector_store %arg6[%c0_16, %c0_17], %28 {strides = array<i32>} : memref<128x128xf32, #tpu.memory_space<vmem>>, vector<128x128xf32>,
    %c2_i32 = arith.constant 2 : i32
    %30 = arith.cmpi eq, %arg1, %c2_i32 : i32
    %31 = arith.extui %30 : i1 to i32
    %c0_i32_18 = arith.constant 0 : i32
    %32 = arith.cmpi ne, %31, %c0_i32_18 : i32
    scf.if %32 {
      %c0_19 = arith.constant 0 : index
      %c0_20 = arith.constant 0 : index
      %33 = vector.load %arg6[%c0_19, %c0_20] : memref<128x128xf32, #tpu.memory_space<vmem>>, vector<128x128xf32>
      %34 = tpu.iota {dimensions = array<i32: 1>} : vector<128x128xi32>
      %c32_i32_21 = arith.constant 32 : i32
      %35 = vector.broadcast %c32_i32_21 : i32 to vector<128x128xi32>
      %36 = arith.cmpi eq, %34, %35 : vector<128x128xi32>
      %cst_22 = arith.constant 0.000000e+00 : f32
      %37 = vector.broadcast %cst_22 : f32 to vector<128x128xf32>
      %38 = arith.select %36, %33, %37 : vector<128x128xi1>, vector<128x128xf32>
      %cst_23 = arith.constant dense<0.000000e+00> : vector<128xf32>
      %39 = vector.multi_reduction <add>, %38, %cst_23 [1] : vector<128x128xf32> to vector<128xf32>
      %40 = vector.shape_cast %39 : vector<128xf32> to vector<128x1xf32>
      %cst_24 = arith.constant 9.99999997E-7 : f32
      %41 = vector.broadcast %cst_24 : f32 to vector<128x1xf32>
      %42 = arith.addf %40, %41 : vector<128x1xf32>
      %43 = tpu.reciprocal %42 {approx = true} : vector<128x1xf32> -> vector<128x1xf32>
      %44 = vector.broadcast %43 : vector<128x1xf32> to vector<128x128xf32>
      %45 = arith.mulf %33, %44 : vector<128x128xf32>
      %c0_25 = arith.constant 0 : index
      %c0_26 = arith.constant 0 : index
      %46 = vector.load %arg6[%c0_25, %c0_26] : memref<128x128xf32, #tpu.memory_space<vmem>>, vector<128x128xf32>
      tpu.vector_store %arg6[%c0_25, %c0_26], %45 {strides = array<i32>} : memref<128x128xf32, #tpu.memory_space<vmem>>, vector<128x128xf32>,
    } else {
    }
    return
  }
  func.func @transform_0(%arg0: i32, %arg1: i32) -> (i32, i32) {
    %c0_i32 = arith.constant 0 : i32
    %c0_i32_0 = arith.constant 0 : i32
    return %arg1, %c0_i32 : i32, i32
  }
  func.func @transform_1(%arg0: i32, %arg1: i32) -> (i32, i32) {
    %c0_i32 = arith.constant 0 : i32
    %c0_i32_0 = arith.constant 0 : i32
    %c0_i32_1 = arith.constant 0 : i32
    return %c0_i32, %c0_i32_0 : i32, i32
  }
  func.func @transform_2(%arg0: i32, %arg1: i32) -> (i32, i32) {
    %c0_i32 = arith.constant 0 : i32
    %c0_i32_0 = arith.constant 0 : i32
    %c0_i32_1 = arith.constant 0 : i32
    return %c0_i32, %c0_i32_0 : i32, i32
  }
  func.func @transform_3(%arg0: i32, %arg1: i32) -> (i32, i32) {
    %c0_i32 = arith.constant 0 : i32
    return %arg0, %arg1 : i32, i32
  }
  func.func @transform_4(%arg0: i32, %arg1: i32) -> (i32, i32) {
    %c0_i32 = arith.constant 0 : i32
    %c0_i32_0 = arith.constant 0 : i32
    return %arg0, %c0_i32 : i32, i32
  }
}

</mosaic_0001>

<llo_original>
// kernel: tpu_custom_call.1
$region0: #{tpu_custom_call.1}
  #allocation0 [shape = 'u32[]', space=smem, size = 0x4, offset = 0x4, fixed_abs, tag = 'smem constant byte address 0x4 - core index']
  #allocation1 [shape = 'u32[144,128]{1,0:T(1,128)}', space=vmem, size = 0x12000, scoped, tag = 'internal scratch']
  %s0 = inlined_call_operand.vmem [shape: f32[768,16], index: 0, kind: input, shape index: {}]
  %s1 = inlined_call_operand.vmem [shape: f32[16,128], index: 1, kind: input, shape index: {}]
  %s2 = inlined_call_operand.vmem [shape: f32[1,128], index: 2, kind: input, shape index: {}]
  %s3 = inlined_call_operand.hbm [shape: f32[256,768], index: 3, kind: input, shape index: {}]
  %s4 = inlined_call_operand.hbm [shape: f32[256,128], index: 4, kind: output, shape index: {}]
  %s5 = sld [smem:[#allocation0]]
  $region61: #{tpu_custom_call.1} parent=0
    _
  %s7 = ssub.s32 1, %s5
  %s8 = scalar_select 0, %s7, %s5
  $region1: #{tpu_custom_call.1} parent=0
    #allocation2 [shape = 'u8[262144]{0}', space=vmem, size = 0x40000, scoped, tag = 'input window, operand 3']
    #allocation3 [shape = 's32[2]{0}', space=sflag, size = 0x8, scoped, tag = 'scoped memory for tpu_custom_call.1']
    #allocation4 [shape = 's32[2]{0}', space=sflag, size = 0x8, scoped, tag = 'scoped memory for tpu_custom_call.1']
    #allocation5 [shape = 'u8[131072]{0}', space=vmem, size = 0x20000, scoped, tag = 'output window, operand 0']
    %9 = vsyncpa [#allocation3], 0
    %s10 = scalar_lea.sflag [#allocation3], 1
    %11 = vsyncpa %s10, 0
    %12 = vsyncpa [#allocation4], 0
    %s13 = scalar_lea.sflag [#allocation4], 1
    %14 = vsyncpa %s13, 0
    loop: start=0, step=1, limit=8
    $region2: #{tpu_custom_call.1} parent=1 // loop_pre_header
      _
    $region3: #{tpu_custom_call.1} parent=1 // loop_header
      %s16 = sphi 0, %s20
      %p17 = scmp.ge.s32.totalorder %s16, 8
      %s23 = sphi 0, %s35
      %s24 = sphi 0, %s31
      %s25 = sphi 0, %s23
      %s26 = sphi 0, %s24
      %s27 = sphi 0, %s25
      %s28 = sphi 0, %s26
      %s38 = sphi 0, %s40
      %s41 = sphi 0, %s38
      %s42 = sphi 0, %s41
      %s58 = sphi 0, %s42
      %s62 = sphi 0, %s62
      %s64 = sphi 0, %s62
      %s65 = sphi 0, %s64
      %s79 = sphi 0, %s65
      %s83 = sphi 0, %s83
      %s85 = sphi 0, %s83
      %s86 = sphi 0, %s85
      %s100 = sphi 0, %s86
      %s108 = sphi 0, %s110
      %s111 = sphi 0, %s108
      %s112 = sphi 0, %s111
      %s128 = sphi 0, %s112
      %s134 = sphi 0, %s136
      %s137 = sphi 0, %s134
      %s138 = sphi 0, %s137
      %s154 = sphi 0, %s138
    $region4: #{tpu_custom_call.1} parent=1 // loop_header_branch
      %19 = sbr.rel (%p17) target = $region8
    $region5: #{tpu_custom_call.1} parent=1 // loop_body
      %s21 = ssub.s32 %s16, 1
      %s22 = ssub.s32 %s16, 2
      %s29 = sadd.s32 1, %s24
      %p30 = scmp.ge.s32.totalorder %s29, 3
      %s31 = scalar_select %p30, 0, %s29
      %s32 = sadd.s32 1, %s23
      %s33 = scalar_select %p30, %s32, %s23
      %p34 = scmp.ge.s32.totalorder %s33, 2
      %s35 = scalar_select %p34, 0, %s33
      %s36 = ssub.s32 %s24, %s31
      %p37 = scmp.eq.s32.totalorder %s36, 0
      %s39 = sadd.s32 %s38, 1
      %s40 = scalar_select %p37, %s38, %s39
      %p43 = pneg %p37
      %p44 = scmp.eq.s32.totalorder %s16, 5
      %p45 = por %p43, %p44
      %p46 = scmp.ne.s32.totalorder %s38, %s41
      %p47 = scmp.eq.s32.totalorder %s16, 0
      %p48 = por %p46, %p47
      %p49 = scmp.ne.s32.totalorder %s38, %s41
      %p50 = scmp.eq.s32.totalorder %s21, 5
      %p51 = por %p49, %p50
      %p52 = scmp.ne.s32.totalorder %s41, %s42
      %p53 = scmp.eq.s32.totalorder %s21, 0
      %p54 = por %p52, %p53
      %p55 = scmp.ne.s32.totalorder %s41, %s42
      %p56 = scmp.eq.s32.totalorder %s22, 5
      %p57 = por %p55, %p56
      %p59 = scmp.ne.s32.totalorder %s42, %s58
      %p60 = scmp.eq.s32.totalorder %s22, 0
      %p61 = por %p59, %p60
      %s63 = sadd.s32 %s62, 1
      %p66 = scmp.eq.s32.totalorder %s16, 5
      %p67 = scmp.ne.s32.totalorder %s62, %s64
      %p68 = scmp.eq.s32.totalorder %s16, 0
      %p69 = por %p67, %p68
      %p70 = scmp.ne.s32.totalorder %s62, %s64
      %p71 = scmp.eq.s32.totalorder %s21, 5
      %p72 = por %p70, %p71
      %p73 = scmp.ne.s32.totalorder %s64, %s65
      %p74 = scmp.eq.s32.totalorder %s21, 0
      %p75 = por %p73, %p74
      %p76 = scmp.ne.s32.totalorder %s64, %s65
      %p77 = scmp.eq.s32.totalorder %s22, 5
      %p78 = por %p76, %p77
      %p80 = scmp.ne.s32.totalorder %s65, %s79
      %p81 = scmp.eq.s32.totalorder %s22, 0
      %p82 = por %p80, %p81
      %s84 = sadd.s32 %s83, 1
      %p87 = scmp.eq.s32.totalorder %s16, 5
      %p88 = scmp.ne.s32.totalorder %s83, %s85
      %p89 = scmp.eq.s32.totalorder %s16, 0
      %p90 = por %p88, %p89
      %p91 = scmp.ne.s32.totalorder %s83, %s85
      %p92 = scmp.eq.s32.totalorder %s21, 5
      %p93 = por %p91, %p92
      %p94 = scmp.ne.s32.totalorder %s85, %s86
      %p95 = scmp.eq.s32.totalorder %s21, 0
      %p96 = por %p94, %p95
      %p97 = scmp.ne.s32.totalorder %s85, %s86
      %p98 = scmp.eq.s32.totalorder %s22, 5
      %p99 = por %p97, %p98
      %p101 = scmp.ne.s32.totalorder %s86, %s100
      %p102 = scmp.eq.s32.totalorder %s22, 0
      %p103 = por %p101, %p102
      %s104 = ssub.s32 %s23, %s35
      %s105 = ssub.s32 %s24, %s31
      %s106 = sor.u32 %s104, %s105
      %p107 = scmp.eq.s32.totalorder %s106, 0
      %s109 = sadd.s32 %s108, 1
      %s110 = scalar_select %p107, %s108, %s109
      %p113 = pneg %p107
      %p114 = scmp.eq.s32.totalorder %s16, 5
      %p115 = por %p113, %p114
      %p116 = scmp.ne.s32.totalorder %s108, %s111
      %p117 = scmp.eq.s32.totalorder %s16, 0
      %p118 = por %p116, %p117
      %p119 = scmp.ne.s32.totalorder %s108, %s111
      %p120 = scmp.eq.s32.totalorder %s21, 5
      %p121 = por %p119, %p120
      %p122 = scmp.ne.s32.totalorder %s111, %s112
      %p123 = scmp.eq.s32.totalorder %s21, 0
      %p124 = por %p122, %p123
      %p125 = scmp.ne.s32.totalorder %s111, %s112
      %p126 = scmp.eq.s32.totalorder %s22, 5
      %p127 = por %p125, %p126
      %p129 = scmp.ne.s32.totalorder %s112, %s128
      %p130 = scmp.eq.s32.totalorder %s22, 0
      %p131 = por %p129, %p130
      %s132 = ssub.s32 %s23, %s35
      %p133 = scmp.eq.s32.totalorder %s132, 0
      %s135 = sadd.s32 %s134, 1
      %s136 = scalar_select %p133, %s134, %s135
      %p139 = pneg %p133
      %p140 = scmp.eq.s32.totalorder %s16, 5
      %p141 = por %p139, %p140
      %p142 = scmp.ne.s32.totalorder %s134, %s137
      %p143 = scmp.eq.s32.totalorder %s16, 0
      %p144 = por %p142, %p143
      %p145 = scmp.ne.s32.totalorder %s134, %s137
      %p146 = scmp.eq.s32.totalorder %s21, 5
      %p147 = por %p145, %p146
      %p148 = scmp.ne.s32.totalorder %s137, %s138
      %p149 = scmp.eq.s32.totalorder %s21, 0
      %p150 = por %p148, %p149
      %p151 = scmp.ne.s32.totalorder %s137, %s138
      %p152 = scmp.eq.s32.totalorder %s22, 5
      %p153 = por %p151, %p152
      %p155 = scmp.ne.s32.totalorder %s138, %s154
      %p156 = scmp.eq.s32.totalorder %s22, 0
      %p157 = por %p155, %p156
      %p158 = scmp.le.s32.totalorder 1, %s16
      %p159 = scmp.lt.s32.totalorder %s16, 7
      %p160 = pnand %p158, %p159
      %p161 = pneg %p160
      // Predicated region
      $region9: #{tpu_custom_call.1} parent=5 // pred_check
        _
      $region10: #{tpu_custom_call.1} parent=5 // pred_check_branch
        %163 = sbr.rel (%p160) target = $region12
      $region11: #{tpu_custom_call.1} parent=5 // pred_region
        %s164 = ssub.s32 %s16, 1
        // Predicated region
        $region13: #{tpu_custom_call.1} parent=11 // pred_check
          %p165 = pneg %p75
        $region14: #{tpu_custom_call.1} parent=11 // pred_check_branch
          %167 = sbr.rel (%p165) target = $region16
        $region15: #{tpu_custom_call.1} parent=11 // pred_region
          _
        $region16: #{tpu_custom_call.1} parent=11 // pred_fallthru
          _
        // Predicated region
        $region17: #{tpu_custom_call.1} parent=11 // pred_check
          %p168 = pneg %p96
        $region18: #{tpu_custom_call.1} parent=11 // pred_check_branch
          %170 = sbr.rel (%p168) target = $region20
        $region19: #{tpu_custom_call.1} parent=11 // pred_region
          _
        $region20: #{tpu_custom_call.1} parent=11 // pred_fallthru
          _
      $region12: #{tpu_custom_call.1} parent=5 // pred_fallthru
        _
      %p171 = scmp.lt.s32.totalorder %s16, 6
      // Predicated region
      $region21: #{tpu_custom_call.1} parent=5 // pred_check
        %p172 = pneg %p171
      $region22: #{tpu_custom_call.1} parent=5 // pred_check_branch
        %174 = sbr.rel (%p172) target = $region24
      $region23: #{tpu_custom_call.1} parent=5 // pred_region
        // Predicated region
        $region25: #{tpu_custom_call.1} parent=23 // pred_check
          %p175 = pneg %p48
        $region26: #{tpu_custom_call.1} parent=23 // pred_check_branch
          %177 = sbr.rel (%p175) target = $region28
        $region27: #{tpu_custom_call.1} parent=23 // pred_region
          %s178 = smul.u32 32, %s24
          %p179 = scmp.lt.s32.totalorder %s178, 95
          %s180 = scalar_select %p179, %s178, 95
          %s181 = smul.addr %s180, 8
          %s182 = scalar_lea.vmem %s0, %s181
          %s183 = smul.u32 32, %s24
        $region28: #{tpu_custom_call.1} parent=23 // pred_fallthru
          _
        // Predicated region
        $region29: #{tpu_custom_call.1} parent=23 // pred_check
          %p184 = pneg %p118
        $region30: #{tpu_custom_call.1} parent=23 // pred_check_branch
          %186 = sbr.rel (%p184) target = $region32
        $region31: #{tpu_custom_call.1} parent=23 // pred_region
          %s187 = sand.u32 %s108, 1
          %s188 = scalar_lea.sflag [#allocation3], %s187
          %s189 = sand.u32 %s108, 1
          %s190 = smul.addr %s189, 256
          %s191 = scalar_lea.vmem [#allocation2], %s190
          %s192 = smul.u32 16, %s23
          %s193 = smul.u32 2, %s24
          %s195 = ssub.s32 4096, 4096
          %196 = vsyncadd %s188, %s195
          %s197 = smul.addr %s192, 6
          %s198 = sadd.s32 %s193, %s197
          %s199 = smul.addr %s198, 128
          %s200 = scalar_lea.hbm %s3, %s199
          %s201 = sshll.u32 %s191, 4
          %s202 = int_to_ptr.vmem [resolvable:$true] %s201
          %207 = dma.hbm_to_vmem [thread:$0]  %s200, 4096, %s202, %s188, 768, 256, 16
        $region32: #{tpu_custom_call.1} parent=23 // pred_fallthru
          _
      $region24: #{tpu_custom_call.1} parent=5 // pred_fallthru
        _
      %p208 = scmp.le.s32.totalorder 1, %s16
      %p209 = scmp.lt.s32.totalorder %s16, 7
      %p210 = pnand %p208, %p209
      %p211 = pneg %p210
      // Predicated region
      $region33: #{tpu_custom_call.1} parent=5 // pred_check
        _
      $region34: #{tpu_custom_call.1} parent=5 // pred_check_branch
        %213 = sbr.rel (%p210) target = $region36
      $region35: #{tpu_custom_call.1} parent=5 // pred_region
        %s214 = ssub.s32 %s16, 1
        %s215 = sand.u32 %s111, 1
        %s216 = scalar_lea.sflag [#allocation3], %s215
        %s217 = sand.u32 %s111, 1
        %s218 = smul.addr %s217, 256
        %s219 = scalar_lea.vmem [#allocation2], %s218
        // Predicated region
        $region37: #{tpu_custom_call.1} parent=35 // pred_check
          %p220 = pneg %p124
        $region38: #{tpu_custom_call.1} parent=35 // pred_check_branch
          %222 = sbr.rel (%p220) target = $region40
        $region39: #{tpu_custom_call.1} parent=35 // pred_region
          %223 = dma.done %s216, 4096
        $region40: #{tpu_custom_call.1} parent=35 // pred_fallthru
          _
        %s224 = smul.u32 32, %s26
        %p225 = scmp.lt.s32.totalorder %s224, 95
        %s226 = scalar_select %p225, %s224, 95
        %s227 = smul.addr %s226, 8
        %s228 = scalar_lea.vmem %s0, %s227
        %p229 = pneg %p54
        %p230 = pneg %p51
        %p231 = pneg %p75
        %p232 = pneg %p72
        %p233 = pneg %p96
        %p234 = pneg %p93
        %s235 = sand.u32 %s111, 1
        %s236 = scalar_lea.sflag [#allocation3], %s235
        %s237 = sand.u32 %s111, 1
        %s238 = smul.addr %s237, 256
        %s239 = scalar_lea.vmem [#allocation2], %s238
        %p240 = pneg %p124
        %p241 = pneg %p121
        %p242 = pneg %p150
        %p243 = pneg %p147
        %s244 = sand.u32 %s137, 1
        %s245 = scalar_lea.sflag [#allocation4], %s244
        %s246 = sand.u32 %s137, 1
        %s247 = smul.addr %s246, 128
        %s248 = scalar_lea.vmem [#allocation5], %s247
        %s249 = smul.u32 32, %s26
        %p250 = scmp.lt.s32.totalorder %s249, 95
        %s251 = scalar_select %p250, %s249, 95
        %s252 = smul.addr %s251, 8
        %s253 = scalar_lea.vmem %s0, %s252
        %s254 = smul.u32 32, %s26
        %s255 = smul.u32 16, %s25
        %s256 = smul.u32 2, %s26
        %s257 = smul.u32 16, %s25
        %p258 = scmp.eq.s32.totalorder %s26, 0
        // Predicated region
        $region41: #{tpu_custom_call.1} parent=35 // pred_check
          %p259 = pneg %p258
        $region42: #{tpu_custom_call.1} parent=35 // pred_check_branch
          %261 = sbr.rel (%p259) target = $region44
        $region43: #{tpu_custom_call.1} parent=35 // pred_region
          %262 = vst [vmem:[%s248] sm:$0xff] 0.0
          %263 = vst [vmem:[%s248 + $0x8] sm:$0xff] 0.0
          %264 = vst [vmem:[%s248 + $0x10] sm:$0xff] 0.0
          %265 = vst [vmem:[%s248 + $0x18] sm:$0xff] 0.0
          %266 = vst [vmem:[%s248 + $0x20] sm:$0xff] 0.0
          %267 = vst [vmem:[%s248 + $0x28] sm:$0xff] 0.0
          %268 = vst [vmem:[%s248 + $0x30] sm:$0xff] 0.0
          %269 = vst [vmem:[%s248 + $0x38] sm:$0xff] 0.0
          %270 = vst [vmem:[%s248 + $0x40] sm:$0xff] 0.0
          %271 = vst [vmem:[%s248 + $0x48] sm:$0xff] 0.0
          %272 = vst [vmem:[%s248 + $0x50] sm:$0xff] 0.0
          %273 = vst [vmem:[%s248 + $0x58] sm:$0xff] 0.0
          %274 = vst [vmem:[%s248 + $0x60] sm:$0xff] 0.0
          %275 = vst [vmem:[%s248 + $0x68] sm:$0xff] 0.0
          %276 = vst [vmem:[%s248 + $0x70] sm:$0xff] 0.0
          %277 = vst [vmem:[%s248 + $0x78] sm:$0xff] 0.0
        $region44: #{tpu_custom_call.1} parent=35 // pred_fallthru
          _
        %v278 = vld [vmem:[%s253] sm:$0xff]
        %v279 = vld [vmem:[%s253 + $0x8] sm:$0xff]
        %v280 = vld [vmem:[%s253 + $0x10] sm:$0xff]
        %v281 = vld [vmem:[%s253 + $0x18] sm:$0xff]
        %v282 = vld [vmem:[%s253 + $0x20] sm:$0xff]
        %v283 = vld [vmem:[%s253 + $0x28] sm:$0xff]
        %v284 = vld [vmem:[%s253 + $0x30] sm:$0xff]
        %v285 = vld [vmem:[%s253 + $0x38] sm:$0xff]
        %v286 = vld [vmem:[%s253 + $0x40] sm:$0xff]
        %v287 = vld [vmem:[%s253 + $0x48] sm:$0xff]
        %v288 = vld [vmem:[%s253 + $0x50] sm:$0xff]
        %v289 = vld [vmem:[%s253 + $0x58] sm:$0xff]
        %v290 = vld [vmem:[%s253 + $0x60] sm:$0xff]
        %v291 = vld [vmem:[%s253 + $0x68] sm:$0xff]
        %v292 = vld [vmem:[%s253 + $0x70] sm:$0xff]
        %v293 = vld [vmem:[%s253 + $0x78] sm:$0xff]
        %v294 = vld [vmem:[%s253 + $0x80] sm:$0xff]
        %v295 = vld [vmem:[%s253 + $0x88] sm:$0xff]
        %v296 = vld [vmem:[%s253 + $0x90] sm:$0xff]
        %v297 = vld [vmem:[%s253 + $0x98] sm:$0xff]
        %v298 = vld [vmem:[%s253 + $0xa0] sm:$0xff]
        %v299 = vld [vmem:[%s253 + $0xa8] sm:$0xff]
        %v300 = vld [vmem:[%s253 + $0xb0] sm:$0xff]
        %v301 = vld [vmem:[%s253 + $0xb8] sm:$0xff]
        %v302 = vld [vmem:[%s253 + $0xc0] sm:$0xff]
        %v303 = vld [vmem:[%s253 + $0xc8] sm:$0xff]
        %v304 = vld [vmem:[%s253 + $0xd0] sm:$0xff]
        %v305 = vld [vmem:[%s253 + $0xd8] sm:$0xff]
        %v306 = vld [vmem:[%s253 + $0xe0] sm:$0xff]
        %v307 = vld [vmem:[%s253 + $0xe8] sm:$0xff]
        %v308 = vld [vmem:[%s253 + $0xf0] sm:$0xff]
        %v309 = vld [vmem:[%s253 + $0xf8] sm:$0xff]
        %v310 = vld [vmem:[%s1] sm:$0xff]
        %v311 = vld [vmem:[%s1 + $0x8] sm:$0xff]
        %v312 = vld [vmem:[%s2] sm:$0x1]
        %v314 = vlaneseq
        %v315 = vshrl.u32 %v314, 7
        %v316 = vsub.s32 0, %v315
        %v317 = vrot.slane %v312, %v316
        %vm319 = vcmask 130048
        %v321 = vsel %vm319, %v278, 0
        %v324 = vsel %vm319, %v279, 0
        %v327 = vsel %vm319, %v280, 0
        %v330 = vsel %vm319, %v281, 0
        %v333 = vsel %vm319, %v282, 0
        %v336 = vsel %vm319, %v283, 0
        %v339 = vsel %vm319, %v284, 0
        %v342 = vsel %vm319, %v285, 0
        %v345 = vsel %vm319, %v286, 0
        %v348 = vsel %vm319, %v287, 0
        %v351 = vsel %vm319, %v288, 0
        %v354 = vsel %vm319, %v289, 0
        %v357 = vsel %vm319, %v290, 0
        %v360 = vsel %vm319, %v291, 0
        %v363 = vsel %vm319, %v292, 0
        %v366 = vsel %vm319, %v293, 0
        %v369 = vsel %vm319, %v294, 0
        %v372 = vsel %vm319, %v295, 0
        %v375 = vsel %vm319, %v296, 0
        %v378 = vsel %vm319, %v297, 0
        %v381 = vsel %vm319, %v298, 0
        %v384 = vsel %vm319, %v299, 0
        %v387 = vsel %vm319, %v300, 0
        %v390 = vsel %vm319, %v301, 0
        %v393 = vsel %vm319, %v302, 0
        %v396 = vsel %vm319, %v303, 0
        %v399 = vsel %vm319, %v304, 0
        %v402 = vsel %vm319, %v305, 0
        %v405 = vsel %vm319, %v306, 0
        %v408 = vsel %vm319, %v307, 0
        %v411 = vsel %vm319, %v308, 0
        %v414 = vsel %vm319, %v309, 0
        %416 = vmatprep.subr.mxu0 0.0
        %417 = vmatpush1.msra.mxu0 %v310
        %418 = vmatprep.subr.mxu0 0.0
        %419 = vmatpush1.msra.mxu0 %v311
        %420 = vmatprep.subr.mxu0 0.0
        %421 = vmatpush1.msra.mxu0 0.0
        %422 = vmatprep.subr.mxu0 0.0
        %423 = vmatpush1.msra.mxu0 0.0
        %424 = vmatprep.subr.mxu0 0.0
        %425 = vmatpush1.msra.mxu0 0.0
        %426 = vmatprep.subr.mxu0 0.0
        %427 = vmatpush1.msra.mxu0 0.0
        %428 = vmatprep.subr.mxu0 0.0
        %429 = vmatpush1.msra.mxu0 0.0
        %430 = vmatprep.subr.mxu0 0.0
        %431 = vmatpush1.msra.mxu0 0.0
        %432 = vmatprep.subr.mxu0 0.0
        %433 = vmatpush1.msra.mxu0 0.0
        %434 = vmatprep.subr.mxu0 0.0
        %435 = vmatpush1.msra.mxu0 0.0
        %436 = vmatprep.subr.mxu0 0.0
        %437 = vmatpush1.msra.mxu0 0.0
        %438 = vmatprep.subr.mxu0 0.0
        %439 = vmatpush1.msra.mxu0 0.0
        %440 = vmatprep.subr.mxu0 0.0
        %441 = vmatpush1.msra.mxu0 0.0
        %442 = vmatprep.subr.mxu0 0.0
        %443 = vmatpush1.msra.mxu0 0.0
        %444 = vmatprep.subr.mxu0 0.0
        %445 = vmatpush1.msra.mxu0 0.0
        %446 = vmatprep.subr.mxu0 0.0
        %447 = vmatpush1.msra.mxu0 0.0
        %448 = vmatprep.subr.mxu0 0.0
        %449 = vmatpush1.msra.mxu0 0.0
        %450 = vmatprep.subr.mxu0 0.0
        %451 = vmatpush1.msra.mxu0 0.0
        %452 = vmatprep.subr.mxu0 0.0
        %453 = vmatpush1.msra.mxu0 0.0
        %454 = vmatprep.subr.mxu0 0.0
        %455 = vmatpush1.msra.mxu0 0.0
        %456 = vmatprep.subr.mxu0 0.0
        %457 = vmatpush1.msra.mxu0 0.0
        %458 = vmatprep.subr.mxu0 0.0
        %459 = vmatpush1.msra.mxu0 0.0
        %460 = vmatprep.subr.mxu0 0.0
        %461 = vmatpush1.msra.mxu0 0.0
        %462 = vmatprep.subr.mxu0 0.0
        %463 = vmatpush1.msra.mxu0 0.0
        %464 = vmatprep.subr.mxu0 0.0
        %465 = vmatpush1.msra.mxu0 0.0
        %466 = vmatprep.subr.mxu0 0.0
        %467 = vmatpush1.msra.mxu0 0.0
        %468 = vmatprep.subr.mxu0 0.0
        %469 = vmatpush1.msra.mxu0 0.0
        %470 = vmatprep.subr.mxu0 0.0
        %471 = vmatpush1.msra.mxu0 0.0
        %472 = vmatprep.subr.mxu0 0.0
        %473 = vmatpush1.msra.mxu0 0.0
        %474 = vmatprep.subr.mxu0 0.0
        %475 = vmatpush1.msra.mxu0 0.0
        %476 = vmatprep.subr.mxu0 0.0
        %477 = vmatpush1.msra.mxu0 0.0
        %478 = vmatprep.subr.mxu0 0.0
        %479 = vmatpush1.msra.mxu0 0.0
        %480 = vmatprep.mubr.f32.mxu0 0.0
        %481 = vmatmul.mubr.f32.gmra.mrb[0].mxu0 %v321
        %v482 = vpop.f32.mrb[0].mxu0
        %v483 = vadd.f32 %v317, %v482
        %v484 = vpop.f32.mrb[0].mxu0
        %485 = vmatprep.mubr.f32.mxu0 0.0
        %486 = vmatmul.mubr.f32.gmra.mrb[0].mxu0 %v324
        %v487 = vpop.f32.mrb[0].mxu0
        %v488 = vadd.f32 %v317, %v487
        %v489 = vpop.f32.mrb[0].mxu0
        %490 = vmatprep.mubr.f32.mxu0 0.0
        %491 = vmatmul.mubr.f32.gmra.mrb[0].mxu0 %v327
        %v492 = vpop.f32.mrb[0].mxu0
        %v493 = vadd.f32 %v317, %v492
        %v494 = vpop.f32.mrb[0].mxu0
        %495 = vmatprep.mubr.f32.mxu0 0.0
        %496 = vmatmul.mubr.f32.gmra.mrb[0].mxu0 %v330
        %v497 = vpop.f32.mrb[0].mxu0
        %v498 = vadd.f32 %v317, %v497
        %v499 = vpop.f32.mrb[0].mxu0
        %500 = vmatprep.mubr.f32.mxu0 0.0
        %501 = vmatmul.mubr.f32.gmra.mrb[0].mxu0 %v333
        %v502 = vpop.f32.mrb[0].mxu0
        %v503 = vadd.f32 %v317, %v502
        %v504 = vpop.f32.mrb[0].mxu0
        %505 = vmatprep.mubr.f32.mxu0 0.0
        %506 = vmatmul.mubr.f32.gmra.mrb[0].mxu0 %v336
        %v507 = vpop.f32.mrb[0].mxu0
        %v508 = vadd.f32 %v317, %v507
        %v509 = vpop.f32.mrb[0].mxu0
        %510 = vmatprep.mubr.f32.mxu0 0.0
        %511 = vmatmul.mubr.f32.gmra.mrb[0].mxu0 %v339
        %v512 = vpop.f32.mrb[0].mxu0
        %v513 = vadd.f32 %v317, %v512
        %v514 = vpop.f32.mrb[0].mxu0
        %515 = vmatprep.mubr.f32.mxu0 0.0
        %516 = vmatmul.mubr.f32.gmra.mrb[0].mxu0 %v342
        %v517 = vpop.f32.mrb[0].mxu0
        %v518 = vadd.f32 %v317, %v517
        %v519 = vpop.f32.mrb[0].mxu0
        %520 = vmatprep.mubr.f32.mxu0 0.0
        %521 = vmatmul.mubr.f32.gmra.mrb[0].mxu0 %v345
        %v522 = vpop.f32.mrb[0].mxu0
        %v523 = vadd.f32 %v317, %v522
        %v524 = vpop.f32.mrb[0].mxu0
        %525 = vmatprep.mubr.f32.mxu0 0.0
        %526 = vmatmul.mubr.f32.gmra.mrb[0].mxu0 %v348
        %v527 = vpop.f32.mrb[0].mxu0
        %v528 = vadd.f32 %v317, %v527
        %v529 = vpop.f32.mrb[0].mxu0
        %530 = vmatprep.mubr.f32.mxu0 0.0
        %531 = vmatmul.mubr.f32.gmra.mrb[0].mxu0 %v351
        %v532 = vpop.f32.mrb[0].mxu0
        %v533 = vadd.f32 %v317, %v532
        %v534 = vpop.f32.mrb[0].mxu0
        %535 = vmatprep.mubr.f32.mxu0 0.0
        %536 = vmatmul.mubr.f32.gmra.mrb[0].mxu0 %v354
        %v537 = vpop.f32.mrb[0].mxu0
        %v538 = vadd.f32 %v317, %v537
        %v539 = vpop.f32.mrb[0].mxu0
        %540 = vmatprep.mubr.f32.mxu0 0.0
        %541 = vmatmul.mubr.f32.gmra.mrb[0].mxu0 %v357
        %v542 = vpop.f32.mrb[0].mxu0
        %v543 = vadd.f32 %v317, %v542
        %v544 = vpop.f32.mrb[0].mxu0
        %545 = vmatprep.mubr.f32.mxu0 0.0
        %546 = vmatmul.mubr.f32.gmra.mrb[0].mxu0 %v360
        %v547 = vpop.f32.mrb[0].mxu0
        %v548 = vadd.f32 %v317, %v547
        %v549 = vpop.f32.mrb[0].mxu0
        %550 = vmatprep.mubr.f32.mxu0 0.0
        %551 = vmatmul.mubr.f32.gmra.mrb[0].mxu0 %v363
        %v552 = vpop.f32.mrb[0].mxu0
        %v553 = vadd.f32 %v317, %v552
        %v554 = vpop.f32.mrb[0].mxu0
        %555 = vmatprep.mubr.f32.mxu0 0.0
        %556 = vmatmul.mubr.f32.gmra.mrb[0].mxu0 %v366
        %v557 = vpop.f32.mrb[0].mxu0
        %v558 = vadd.f32 %v317, %v557
        %v559 = vpop.f32.mrb[0].mxu0
        %560 = vmatprep.mubr.f32.mxu0 0.0
        %561 = vmatmul.mubr.f32.gmra.mrb[0].mxu0 %v369
        %v562 = vpop.f32.mrb[0].mxu0
        %v563 = vadd.f32 %v317, %v562
        %v564 = vpop.f32.mrb[0].mxu0
        %565 = vmatprep.mubr.f32.mxu0 0.0
        %566 = vmatmul.mubr.f32.gmra.mrb[0].mxu0 %v372
        %v567 = vpop.f32.mrb[0].mxu0
        %v568 = vadd.f32 %v317, %v567
        %v569 = vpop.f32.mrb[0].mxu0
        %570 = vmatprep.mubr.f32.mxu0 0.0
        %571 = vmatmul.mubr.f32.gmra.mrb[0].mxu0 %v375
        %v572 = vpop.f32.mrb[0].mxu0
        %v573 = vadd.f32 %v317, %v572
        %v574 = vpop.f32.mrb[0].mxu0
        %575 = vmatprep.mubr.f32.mxu0 0.0
        %576 = vmatmul.mubr.f32.gmra.mrb[0].mxu0 %v378
        %v577 = vpop.f32.mrb[0].mxu0
        %v578 = vadd.f32 %v317, %v577
        %v579 = vpop.f32.mrb[0].mxu0
        %580 = vmatprep.mubr.f32.mxu0 0.0
        %581 = vmatmul.mubr.f32.gmra.mrb[0].mxu0 %v381
        %v582 = vpop.f32.mrb[0].mxu0
        %v583 = vadd.f32 %v317, %v582
        %v584 = vpop.f32.mrb[0].mxu0
        %585 = vmatprep.mubr.f32.mxu0 0.0
        %586 = vmatmul.mubr.f32.gmra.mrb[0].mxu0 %v384
        %v587 = vpop.f32.mrb[0].mxu0
        %v588 = vadd.f32 %v317, %v587
        %v589 = vpop.f32.mrb[0].mxu0
        %590 = vmatprep.mubr.f32.mxu0 0.0
        %591 = vmatmul.mubr.f32.gmra.mrb[0].mxu0 %v387
        %v592 = vpop.f32.mrb[0].mxu0
        %v593 = vadd.f32 %v317, %v592
        %v594 = vpop.f32.mrb[0].mxu0
        %595 = vmatprep.mubr.f32.mxu0 0.0
        %596 = vmatmul.mubr.f32.gmra.mrb[0].mxu0 %v390
        %v597 = vpop.f32.mrb[0].mxu0
        %v598 = vadd.f32 %v317, %v597
        %v599 = vpop.f32.mrb[0].mxu0
        %600 = vmatprep.mubr.f32.mxu0 0.0
        %601 = vmatmul.mubr.f32.gmra.mrb[0].mxu0 %v393
        %v602 = vpop.f32.mrb[0].mxu0
        %v603 = vadd.f32 %v317, %v602
        %v604 = vpop.f32.mrb[0].mxu0
        %605 = vmatprep.mubr.f32.mxu0 0.0
        %606 = vmatmul.mubr.f32.gmra.mrb[0].mxu0 %v396
        %v607 = vpop.f32.mrb[0].mxu0
        %v608 = vadd.f32 %v317, %v607
        %v609 = vpop.f32.mrb[0].mxu0
        %610 = vmatprep.mubr.f32.mxu0 0.0
        %611 = vmatmul.mubr.f32.gmra.mrb[0].mxu0 %v399
        %v612 = vpop.f32.mrb[0].mxu0
        %v613 = vadd.f32 %v317, %v612
        %v614 = vpop.f32.mrb[0].mxu0
        %615 = vmatprep.mubr.f32.mxu0 0.0
        %616 = vmatmul.mubr.f32.gmra.mrb[0].mxu0 %v402
        %v617 = vpop.f32.mrb[0].mxu0
        %v618 = vadd.f32 %v317, %v617
        %v619 = vpop.f32.mrb[0].mxu0
        %620 = vmatprep.mubr.f32.mxu0 0.0
        %621 = vmatmul.mubr.f32.gmra.mrb[0].mxu0 %v405
        %v622 = vpop.f32.mrb[0].mxu0
        %v623 = vadd.f32 %v317, %v622
        %v624 = vpop.f32.mrb[0].mxu0
        %625 = vmatprep.mubr.f32.mxu0 0.0
        %626 = vmatmul.mubr.f32.gmra.mrb[0].mxu0 %v408
        %v627 = vpop.f32.mrb[0].mxu0
        %v628 = vadd.f32 %v317, %v627
        %v629 = vpop.f32.mrb[0].mxu0
        %630 = vmatprep.mubr.f32.mxu0 0.0
        %631 = vmatmul.mubr.f32.gmra.mrb[0].mxu0 %v411
        %v632 = vpop.f32.mrb[0].mxu0
        %v633 = vadd.f32 %v317, %v632
        %v634 = vpop.f32.mrb[0].mxu0
        %635 = vmatprep.mubr.f32.mxu0 0.0
        %636 = vmatmul.mubr.f32.gmra.mrb[0].mxu0 %v414
        %v637 = vpop.f32.mrb[0].mxu0
        %v638 = vadd.f32 %v317, %v637
        %v639 = vpop.f32.mrb[0].mxu0
        %640 = vdwg.mxu0
        %v641 = vlaneseq
        %v642 = vand.u32 %v641, 127
        %vm643 = vcmp.lt.s32.totalorder %v642, 32
        %v644 = vmax.f32 %v483, 0.0
        %v645 = vmax.f32 %v488, 0.0
        %v646 = vmax.f32 %v493, 0.0
        %v647 = vmax.f32 %v498, 0.0
        %v648 = vmax.f32 %v503, 0.0
        %v649 = vmax.f32 %v508, 0.0
        %v650 = vmax.f32 %v513, 0.0
        %v651 = vmax.f32 %v518, 0.0
        %v652 = vmax.f32 %v523, 0.0
        %v653 = vmax.f32 %v528, 0.0
        %v654 = vmax.f32 %v533, 0.0
        %v655 = vmax.f32 %v538, 0.0
        %v656 = vmax.f32 %v543, 0.0
        %v657 = vmax.f32 %v548, 0.0
        %v658 = vmax.f32 %v553, 0.0
        %v659 = vmax.f32 %v558, 0.0
        %v660 = vmax.f32 %v563, 0.0
        %v661 = vmax.f32 %v568, 0.0
        %v662 = vmax.f32 %v573, 0.0
        %v663 = vmax.f32 %v578, 0.0
        %v664 = vmax.f32 %v583, 0.0
        %v665 = vmax.f32 %v588, 0.0
        %v666 = vmax.f32 %v593, 0.0
        %v667 = vmax.f32 %v598, 0.0
        %v668 = vmax.f32 %v603, 0.0
        %v669 = vmax.f32 %v608, 0.0
        %v670 = vmax.f32 %v613, 0.0
        %v671 = vmax.f32 %v618, 0.0
        %v672 = vmax.f32 %v623, 0.0
        %v673 = vmax.f32 %v628, 0.0
        %v674 = vmax.f32 %v633, 0.0
        %v675 = vmax.f32 %v638, 0.0
        %v676 = vsel %vm643, %v644, 0.0
        %v677 = vsel %vm643, %v645, 0.0
        %v678 = vsel %vm643, %v646, 0.0
        %v679 = vsel %vm643, %v647, 0.0
        %v680 = vsel %vm643, %v648, 0.0
        %v681 = vsel %vm643, %v649, 0.0
        %v682 = vsel %vm643, %v650, 0.0
        %v683 = vsel %vm643, %v651, 0.0
        %v684 = vsel %vm643, %v652, 0.0
        %v685 = vsel %vm643, %v653, 0.0
        %v686 = vsel %vm643, %v654, 0.0
        %v687 = vsel %vm643, %v655, 0.0
        %v688 = vsel %vm643, %v656, 0.0
        %v689 = vsel %vm643, %v657, 0.0
        %v690 = vsel %vm643, %v658, 0.0
        %v691 = vsel %vm643, %v659, 0.0
        %v692 = vsel %vm643, %v660, 0.0
        %v693 = vsel %vm643, %v661, 0.0
        %v694 = vsel %vm643, %v662, 0.0
        %v695 = vsel %vm643, %v663, 0.0
        %v696 = vsel %vm643, %v664, 0.0
        %v697 = vsel %vm643, %v665, 0.0
        %v698 = vsel %vm643, %v666, 0.0
        %v699 = vsel %vm643, %v667, 0.0
        %v700 = vsel %vm643, %v668, 0.0
        %v701 = vsel %vm643, %v669, 0.0
        %v702 = vsel %vm643, %v670, 0.0
        %v703 = vsel %vm643, %v671, 0.0
        %v704 = vsel %vm643, %v672, 0.0
        %v705 = vsel %vm643, %v673, 0.0
        %v706 = vsel %vm643, %v674, 0.0
        %v707 = vsel %vm643, %v675, 0.0
        %vm708 = vcmp.eq.s32.totalorder %v642, 32
        %v709 = vsel %vm708, %v483, 0.0
        %v710 = vsel %vm708, %v488, 0.0
        %v711 = vsel %vm708, %v493, 0.0
        %v712 = vsel %vm708, %v498, 0.0
        %v713 = vsel %vm708, %v503, 0.0
        %v714 = vsel %vm708, %v508, 0.0
        %v715 = vsel %vm708, %v513, 0.0
        %v716 = vsel %vm708, %v518, 0.0
        %v717 = vsel %vm708, %v523, 0.0
        %v718 = vsel %vm708, %v528, 0.0
        %v719 = vsel %vm708, %v533, 0.0
        %v720 = vsel %vm708, %v538, 0.0
        %v721 = vsel %vm708, %v543, 0.0
        %v722 = vsel %vm708, %v548, 0.0
        %v723 = vsel %vm708, %v553, 0.0
        %v724 = vsel %vm708, %v558, 0.0
        %v725 = vsel %vm708, %v563, 0.0
        %v726 = vsel %vm708, %v568, 0.0
        %v727 = vsel %vm708, %v573, 0.0
        %v728 = vsel %vm708, %v578, 0.0
        %v729 = vsel %vm708, %v583, 0.0
        %v730 = vsel %vm708, %v588, 0.0
        %v731 = vsel %vm708, %v593, 0.0
        %v732 = vsel %vm708, %v598, 0.0
        %v733 = vsel %vm708, %v603, 0.0
        %v734 = vsel %vm708, %v608, 0.0
        %v735 = vsel %vm708, %v613, 0.0
        %v736 = vsel %vm708, %v618, 0.0
        %v737 = vsel %vm708, %v623, 0.0
        %v738 = vsel %vm708, %v628, 0.0
        %v739 = vsel %vm708, %v633, 0.0
        %v740 = vsel %vm708, %v638, 0.0
        %741 = vadd.xlane.f32.xlu0 %v709
        %v742 = vpop.xlane.xlu0 %741
        %743 = vadd.xlane.f32.xlu0 %v710
        %v744 = vpop.xlane.xlu0 %743
        %745 = vadd.xlane.f32.xlu0 %v711
        %v746 = vpop.xlane.xlu0 %745
        %747 = vadd.xlane.f32.xlu0 %v712
        %v748 = vpop.xlane.xlu0 %747
        %749 = vadd.xlane.f32.xlu0 %v713
        %v750 = vpop.xlane.xlu0 %749
        %751 = vadd.xlane.f32.xlu0 %v714
        %v752 = vpop.xlane.xlu0 %751
        %753 = vadd.xlane.f32.xlu0 %v715
        %v754 = vpop.xlane.xlu0 %753
        %755 = vadd.xlane.f32.xlu0 %v716
        %v756 = vpop.xlane.xlu0 %755
        %757 = vadd.xlane.f32.xlu0 %v717
        %v758 = vpop.xlane.xlu0 %757
        %759 = vadd.xlane.f32.xlu0 %v718
        %v760 = vpop.xlane.xlu0 %759
        %761 = vadd.xlane.f32.xlu0 %v719
        %v762 = vpop.xlane.xlu0 %761
        %763 = vadd.xlane.f32.xlu0 %v720
        %v764 = vpop.xlane.xlu0 %763
        %765 = vadd.xlane.f32.xlu0 %v721
        %v766 = vpop.xlane.xlu0 %765
        %767 = vadd.xlane.f32.xlu0 %v722
        %v768 = vpop.xlane.xlu0 %767
        %769 = vadd.xlane.f32.xlu0 %v723
        %v770 = vpop.xlane.xlu0 %769
        %771 = vadd.xlane.f32.xlu0 %v724
        %v772 = vpop.xlane.xlu0 %771
        %773 = vadd.xlane.f32.xlu0 %v725
        %v774 = vpop.xlane.xlu0 %773
        %775 = vadd.xlane.f32.xlu0 %v726
        %v776 = vpop.xlane.xlu0 %775
        %777 = vadd.xlane.f32.xlu0 %v727
        %v778 = vpop.xlane.xlu0 %777
        %779 = vadd.xlane.f32.xlu0 %v728
        %v780 = vpop.xlane.xlu0 %779
        %781 = vadd.xlane.f32.xlu0 %v729
        %v782 = vpop.xlane.xlu0 %781
        %783 = vadd.xlane.f32.xlu0 %v730
        %v784 = vpop.xlane.xlu0 %783
        %785 = vadd.xlane.f32.xlu0 %v731
        %v786 = vpop.xlane.xlu0 %785
        %787 = vadd.xlane.f32.xlu0 %v732
        %v788 = vpop.xlane.xlu0 %787
        %789 = vadd.xlane.f32.xlu0 %v733
        %v790 = vpop.xlane.xlu0 %789
        %791 = vadd.xlane.f32.xlu0 %v734
        %v792 = vpop.xlane.xlu0 %791
        %793 = vadd.xlane.f32.xlu0 %v735
        %v794 = vpop.xlane.xlu0 %793
        %795 = vadd.xlane.f32.xlu0 %v736
        %v796 = vpop.xlane.xlu0 %795
        %797 = vadd.xlane.f32.xlu0 %v737
        %v798 = vpop.xlane.xlu0 %797
        %799 = vadd.xlane.f32.xlu0 %v738
        %v800 = vpop.xlane.xlu0 %799
        %801 = vadd.xlane.f32.xlu0 %v739
        %v802 = vpop.xlane.xlu0 %801
        %803 = vadd.xlane.f32.xlu0 %v740
        %v804 = vpop.xlane.xlu0 %803
        %v805 = vmul.f32 %v676, %v742
        %v806 = vmul.f32 %v677, %v744
        %v807 = vmul.f32 %v678, %v746
        %v808 = vmul.f32 %v679, %v748
        %v809 = vmul.f32 %v680, %v750
        %v810 = vmul.f32 %v681, %v752
        %v811 = vmul.f32 %v682, %v754
        %v812 = vmul.f32 %v683, %v756
        %v813 = vmul.f32 %v684, %v758
        %v814 = vmul.f32 %v685, %v760
        %v815 = vmul.f32 %v686, %v762
        %v816 = vmul.f32 %v687, %v764
        %v817 = vmul.f32 %v688, %v766
        %v818 = vmul.f32 %v689, %v768
        %v819 = vmul.f32 %v690, %v770
        %v820 = vmul.f32 %v691, %v772
        %v821 = vmul.f32 %v692, %v774
        %v822 = vmul.f32 %v693, %v776
        %v823 = vmul.f32 %v694, %v778
        %v824 = vmul.f32 %v695, %v780
        %v825 = vmul.f32 %v696, %v782
        %v826 = vmul.f32 %v697, %v784
        %v827 = vmul.f32 %v698, %v786
        %v828 = vmul.f32 %v699, %v788
        %v829 = vmul.f32 %v700, %v790
        %v830 = vmul.f32 %v701, %v792
        %v831 = vmul.f32 %v702, %v794
        %v832 = vmul.f32 %v703, %v796
        %v833 = vmul.f32 %v704, %v798
        %v834 = vmul.f32 %v705, %v800
        %v835 = vmul.f32 %v706, %v802
        %v836 = vmul.f32 %v707, %v804
        %v837 = vadd.f32 %v805, %v709
        %v838 = vadd.f32 %v806, %v710
        %v839 = vadd.f32 %v807, %v711
        %v840 = vadd.f32 %v808, %v712
        %v841 = vadd.f32 %v809, %v713
        %v842 = vadd.f32 %v810, %v714
        %v843 = vadd.f32 %v811, %v715
        %v844 = vadd.f32 %v812, %v716
        %v845 = vadd.f32 %v813, %v717
        %v846 = vadd.f32 %v814, %v718
        %v847 = vadd.f32 %v815, %v719
        %v848 = vadd.f32 %v816, %v720
        %v849 = vadd.f32 %v817, %v721
        %v850 = vadd.f32 %v818, %v722
        %v851 = vadd.f32 %v819, %v723
        %v852 = vadd.f32 %v820, %v724
        %v853 = vadd.f32 %v821, %v725
        %v854 = vadd.f32 %v822, %v726
        %v855 = vadd.f32 %v823, %v727
        %v856 = vadd.f32 %v824, %v728
        %v857 = vadd.f32 %v825, %v729
        %v858 = vadd.f32 %v826, %v730
        %v859 = vadd.f32 %v827, %v731
        %v860 = vadd.f32 %v828, %v732
        %v861 = vadd.f32 %v829, %v733
        %v862 = vadd.f32 %v830, %v734
        %v863 = vadd.f32 %v831, %v735
        %v864 = vadd.f32 %v832, %v736
        %v865 = vadd.f32 %v833, %v737
        %v866 = vadd.f32 %v834, %v738
        %v867 = vadd.f32 %v835, %v739
        %v868 = vadd.f32 %v836, %v740
        %v869 = vld [vmem:[%s248] sm:$0xff]
        %v870 = vld [vmem:[%s248 + $0x8] sm:$0xff]
        %v871 = vld [vmem:[%s248 + $0x10] sm:$0xff]
        %v872 = vld [vmem:[%s248 + $0x18] sm:$0xff]
        %v873 = vld [vmem:[%s248 + $0x20] sm:$0xff]
        %v874 = vld [vmem:[%s248 + $0x28] sm:$0xff]
        %v875 = vld [vmem:[%s248 + $0x30] sm:$0xff]
        %v876 = vld [vmem:[%s248 + $0x38] sm:$0xff]
        %v877 = vld [vmem:[%s248 + $0x40] sm:$0xff]
        %v878 = vld [vmem:[%s248 + $0x48] sm:$0xff]
        %v879 = vld [vmem:[%s248 + $0x50] sm:$0xff]
        %v880 = vld [vmem:[%s248 + $0x58] sm:$0xff]
        %v881 = vld [vmem:[%s248 + $0x60] sm:$0xff]
        %v882 = vld [vmem:[%s248 + $0x68] sm:$0xff]
        %v883 = vld [vmem:[%s248 + $0x70] sm:$0xff]
        %v884 = vld [vmem:[%s248 + $0x78] sm:$0xff]
        %v885 = vld [vmem:[%s219] sm:$0xff]
        %v886 = vld [vmem:[%s219 + $0x8] sm:$0xff]
        %v887 = vld [vmem:[%s219 + $0x10] sm:$0xff]
        %v888 = vld [vmem:[%s219 + $0x18] sm:$0xff]
        %v889 = vld [vmem:[%s219 + $0x20] sm:$0xff]
        %v890 = vld [vmem:[%s219 + $0x28] sm:$0xff]
        %v891 = vld [vmem:[%s219 + $0x30] sm:$0xff]
        %v892 = vld [vmem:[%s219 + $0x38] sm:$0xff]
        %v893 = vld [vmem:[%s219 + $0x40] sm:$0xff]
        %v894 = vld [vmem:[%s219 + $0x48] sm:$0xff]
        %v895 = vld [vmem:[%s219 + $0x50] sm:$0xff]
        %v896 = vld [vmem:[%s219 + $0x58] sm:$0xff]
        %v897 = vld [vmem:[%s219 + $0x60] sm:$0xff]
        %v898 = vld [vmem:[%s219 + $0x68] sm:$0xff]
        %v899 = vld [vmem:[%s219 + $0x70] sm:$0xff]
        %v900 = vld [vmem:[%s219 + $0x78] sm:$0xff]
        %v901 = vld [vmem:[%s219 + $0x80] sm:$0xff]
        %v902 = vld [vmem:[%s219 + $0x88] sm:$0xff]
        %v903 = vld [vmem:[%s219 + $0x90] sm:$0xff]
        %v904 = vld [vmem:[%s219 + $0x98] sm:$0xff]
        %v905 = vld [vmem:[%s219 + $0xa0] sm:$0xff]
        %v906 = vld [vmem:[%s219 + $0xa8] sm:$0xff]
        %v907 = vld [vmem:[%s219 + $0xb0] sm:$0xff]
        %v908 = vld [vmem:[%s219 + $0xb8] sm:$0xff]
        %v909 = vld [vmem:[%s219 + $0xc0] sm:$0xff]
        %v910 = vld [vmem:[%s219 + $0xc8] sm:$0xff]
        %v911 = vld [vmem:[%s219 + $0xd0] sm:$0xff]
        %v912 = vld [vmem:[%s219 + $0xd8] sm:$0xff]
        %v913 = vld [vmem:[%s219 + $0xe0] sm:$0xff]
        %v914 = vld [vmem:[%s219 + $0xe8] sm:$0xff]
        %v915 = vld [vmem:[%s219 + $0xf0] sm:$0xff]
        %v916 = vld [vmem:[%s219 + $0xf8] sm:$0xff]
        %917 = vmatprep.subr.mxu0 0.0
        %918 = vmatpush1.msra.mxu0 %v837
        %919 = vmatprep.subr.mxu0 0.0
        %920 = vmatpush1.msra.mxu0 %v838
        %921 = vmatprep.subr.mxu0 0.0
        %922 = vmatpush1.msra.mxu0 %v839
        %923 = vmatprep.subr.mxu0 0.0
        %924 = vmatpush1.msra.mxu0 %v840
        %925 = vmatprep.subr.mxu0 0.0
        %926 = vmatpush1.msra.mxu0 %v841
        %927 = vmatprep.subr.mxu0 0.0
        %928 = vmatpush1.msra.mxu0 %v842
        %929 = vmatprep.subr.mxu0 0.0
        %930 = vmatpush1.msra.mxu0 %v843
        %931 = vmatprep.subr.mxu0 0.0
        %932 = vmatpush1.msra.mxu0 %v844
        %933 = vmatprep.subr.mxu0 0.0
        %934 = vmatpush1.msra.mxu0 %v845
        %935 = vmatprep.subr.mxu0 0.0
        %936 = vmatpush1.msra.mxu0 %v846
        %937 = vmatprep.subr.mxu0 0.0
        %938 = vmatpush1.msra.mxu0 %v847
        %939 = vmatprep.subr.mxu0 0.0
        %940 = vmatpush1.msra.mxu0 %v848
        %941 = vmatprep.subr.mxu0 0.0
        %942 = vmatpush1.msra.mxu0 %v849
        %943 = vmatprep.subr.mxu0 0.0
        %944 = vmatpush1.msra.mxu0 %v850
        %945 = vmatprep.subr.mxu0 0.0
        %946 = vmatpush1.msra.mxu0 %v851
        %947 = vmatprep.subr.mxu0 0.0
        %948 = vmatpush1.msra.mxu0 %v852
        %949 = vmatprep.subr.mxu0 0.0
        %950 = vmatpush1.msra.mxu0 %v853
        %951 = vmatprep.subr.mxu0 0.0
        %952 = vmatpush1.msra.mxu0 %v854
        %953 = vmatprep.subr.mxu0 0.0
        %954 = vmatpush1.msra.mxu0 %v855
        %955 = vmatprep.subr.mxu0 0.0
        %956 = vmatpush1.msra.mxu0 %v856
        %957 = vmatprep.subr.mxu0 0.0
        %958 = vmatpush1.msra.mxu0 %v857
        %959 = vmatprep.subr.mxu0 0.0
        %960 = vmatpush1.msra.mxu0 %v858
        %961 = vmatprep.subr.mxu0 0.0
        %962 = vmatpush1.msra.mxu0 %v859
        %963 = vmatprep.subr.mxu0 0.0
        %964 = vmatpush1.msra.mxu0 %v860
        %965 = vmatprep.subr.mxu0 0.0
        %966 = vmatpush1.msra.mxu0 %v861
        %967 = vmatprep.subr.mxu0 0.0
        %968 = vmatpush1.msra.mxu0 %v862
        %969 = vmatprep.subr.mxu0 0.0
        %970 = vmatpush1.msra.mxu0 %v863
        %971 = vmatprep.subr.mxu0 0.0
        %972 = vmatpush1.msra.mxu0 %v864
        %973 = vmatprep.subr.mxu0 0.0
        %974 = vmatpush1.msra.mxu0 %v865
        %975 = vmatprep.subr.mxu0 0.0
        %976 = vmatpush1.msra.mxu0 %v866
        %977 = vmatprep.subr.mxu0 0.0
        %978 = vmatpush1.msra.mxu0 %v867
        %979 = vmatprep.subr.mxu0 0.0
        %980 = vmatpush1.msra.mxu0 %v868
        %981 = vmatprep.mubr.f32.mxu0 %v886
        %982 = vmatmul.mubr.f32.gmra.mrb[0].mxu0 %v885
        %v983 = vpop.f32.mrb[0].mxu0
        %v984 = vadd.f32 0.0, %v983
        %v985 = vpop.f32.mrb[0].mxu0
        %986 = vmatprep.mubr.f32.mxu0 %v888
        %987 = vmatmul.mubr.f32.gmra.mrb[0].mxu0 %v887
        %v988 = vpop.f32.mrb[0].mxu0
        %v989 = vadd.f32 0.0, %v988
        %v990 = vpop.f32.mrb[0].mxu0
        %991 = vmatprep.mubr.f32.mxu0 %v890
        %992 = vmatmul.mubr.f32.gmra.mrb[0].mxu0 %v889
        %v993 = vpop.f32.mrb[0].mxu0
        %v994 = vadd.f32 0.0, %v993
        %v995 = vpop.f32.mrb[0].mxu0
        %996 = vmatprep.mubr.f32.mxu0 %v892
        %997 = vmatmul.mubr.f32.gmra.mrb[0].mxu0 %v891
        %v998 = vpop.f32.mrb[0].mxu0
        %v999 = vadd.f32 0.0, %v998
        %v1000 = vpop.f32.mrb[0].mxu0
        %1001 = vmatprep.mubr.f32.mxu0 %v894
        %1002 = vmatmul.mubr.f32.gmra.mrb[0].mxu0 %v893
        %v1003 = vpop.f32.mrb[0].mxu0
        %v1004 = vadd.f32 0.0, %v1003
        %v1005 = vpop.f32.mrb[0].mxu0
        %1006 = vmatprep.mubr.f32.mxu0 %v896
        %1007 = vmatmul.mubr.f32.gmra.mrb[0].mxu0 %v895
        %v1008 = vpop.f32.mrb[0].mxu0
        %v1009 = vadd.f32 0.0, %v1008
        %v1010 = vpop.f32.mrb[0].mxu0
        %1011 = vmatprep.mubr.f32.mxu0 %v898
        %1012 = vmatmul.mubr.f32.gmra.mrb[0].mxu0 %v897
        %v1013 = vpop.f32.mrb[0].mxu0
        %v1014 = vadd.f32 0.0, %v1013
        %v1015 = vpop.f32.mrb[0].mxu0
        %1016 = vmatprep.mubr.f32.mxu0 %v900
        %1017 = vmatmul.mubr.f32.gmra.mrb[0].mxu0 %v899
        %v1018 = vpop.f32.mrb[0].mxu0
        %v1019 = vadd.f32 0.0, %v1018
        %v1020 = vpop.f32.mrb[0].mxu0
        %1021 = vmatprep.mubr.f32.mxu0 %v902
        %1022 = vmatmul.mubr.f32.gmra.mrb[0].mxu0 %v901
        %v1023 = vpop.f32.mrb[0].mxu0
        %v1024 = vadd.f32 0.0, %v1023
        %v1025 = vpop.f32.mrb[0].mxu0
        %1026 = vmatprep.mubr.f32.mxu0 %v904
        %1027 = vmatmul.mubr.f32.gmra.mrb[0].mxu0 %v903
        %v1028 = vpop.f32.mrb[0].mxu0
        %v1029 = vadd.f32 0.0, %v1028
        %v1030 = vpop.f32.mrb[0].mxu0
        %1031 = vmatprep.mubr.f32.mxu0 %v906
        %1032 = vmatmul.mubr.f32.gmra.mrb[0].mxu0 %v905
        %v1033 = vpop.f32.mrb[0].mxu0
        %v1034 = vadd.f32 0.0, %v1033
        %v1035 = vpop.f32.mrb[0].mxu0
        %1036 = vmatprep.mubr.f32.mxu0 %v908
        %1037 = vmatmul.mubr.f32.gmra.mrb[0].mxu0 %v907
        %v1038 = vpop.f32.mrb[0].mxu0
        %v1039 = vadd.f32 0.0, %v1038
        %v1040 = vpop.f32.mrb[0].mxu0
        %1041 = vmatprep.mubr.f32.mxu0 %v910
        %1042 = vmatmul.mubr.f32.gmra.mrb[0].mxu0 %v909
        %v1043 = vpop.f32.mrb[0].mxu0
        %v1044 = vadd.f32 0.0, %v1043
        %v1045 = vpop.f32.mrb[0].mxu0
        %1046 = vmatprep.mubr.f32.mxu0 %v912
        %1047 = vmatmul.mubr.f32.gmra.mrb[0].mxu0 %v911
        %v1048 = vpop.f32.mrb[0].mxu0
        %v1049 = vadd.f32 0.0, %v1048
        %v1050 = vpop.f32.mrb[0].mxu0
        %1051 = vmatprep.mubr.f32.mxu0 %v914
        %1052 = vmatmul.mubr.f32.gmra.mrb[0].mxu0 %v913
        %v1053 = vpop.f32.mrb[0].mxu0
        %v1054 = vadd.f32 0.0, %v1053
        %v1055 = vpop.f32.mrb[0].mxu0
        %1056 = vmatprep.mubr.f32.mxu0 %v916
        %1057 = vmatmul.mubr.f32.gmra.mrb[0].mxu0 %v915
        %v1058 = vpop.f32.mrb[0].mxu0
        %v1059 = vadd.f32 0.0, %v1058
        %v1060 = vpop.f32.mrb[0].mxu0
        %1061 = vdwg.mxu0
        %v1062 = vadd.f32 %v869, %v984
        %v1063 = vadd.f32 %v870, %v989
        %v1064 = vadd.f32 %v871, %v994
        %v1065 = vadd.f32 %v872, %v999
        %v1066 = vadd.f32 %v873, %v1004
        %v1067 = vadd.f32 %v874, %v1009
        %v1068 = vadd.f32 %v875, %v1014
        %v1069 = vadd.f32 %v876, %v1019
        %v1070 = vadd.f32 %v877, %v1024
        %v1071 = vadd.f32 %v878, %v1029
        %v1072 = vadd.f32 %v879, %v1034
        %v1073 = vadd.f32 %v880, %v1039
        %v1074 = vadd.f32 %v881, %v1044
        %v1075 = vadd.f32 %v882, %v1049
        %v1076 = vadd.f32 %v883, %v1054
        %v1077 = vadd.f32 %v884, %v1059
        %1078 = vst [vmem:[%s248] sm:$0xff] %v1062
        %1079 = vst [vmem:[%s248 + $0x8] sm:$0xff] %v1063
        %1080 = vst [vmem:[%s248 + $0x10] sm:$0xff] %v1064
        %1081 = vst [vmem:[%s248 + $0x18] sm:$0xff] %v1065
        %1082 = vst [vmem:[%s248 + $0x20] sm:$0xff] %v1066
        %1083 = vst [vmem:[%s248 + $0x28] sm:$0xff] %v1067
        %1084 = vst [vmem:[%s248 + $0x30] sm:$0xff] %v1068
        %1085 = vst [vmem:[%s248 + $0x38] sm:$0xff] %v1069
        %1086 = vst [vmem:[%s248 + $0x40] sm:$0xff] %v1070
        %1087 = vst [vmem:[%s248 + $0x48] sm:$0xff] %v1071
        %1088 = vst [vmem:[%s248 + $0x50] sm:$0xff] %v1072
        %1089 = vst [vmem:[%s248 + $0x58] sm:$0xff] %v1073
        %1090 = vst [vmem:[%s248 + $0x60] sm:$0xff] %v1074
        %1091 = vst [vmem:[%s248 + $0x68] sm:$0xff] %v1075
        %1092 = vst [vmem:[%s248 + $0x70] sm:$0xff] %v1076
        %1093 = vst [vmem:[%s248 + $0x78] sm:$0xff] %v1077
        %p1094 = scmp.eq.s32.totalorder %s26, 2
        // Predicated region
        $region45: #{tpu_custom_call.1} parent=35 // pred_check
          %p1095 = pneg %p1094
        $region46: #{tpu_custom_call.1} parent=35 // pred_check_branch
          %1097 = sbr.rel (%p1095) target = $region48
        $region47: #{tpu_custom_call.1} parent=35 // pred_region
          %v1098 = vld [vmem:[%s248] sm:$0xff]
          %v1099 = vld [vmem:[%s248 + $0x8] sm:$0xff]
          %v1100 = vld [vmem:[%s248 + $0x10] sm:$0xff]
          %v1101 = vld [vmem:[%s248 + $0x18] sm:$0xff]
          %v1102 = vld [vmem:[%s248 + $0x20] sm:$0xff]
          %v1103 = vld [vmem:[%s248 + $0x28] sm:$0xff]
          %v1104 = vld [vmem:[%s248 + $0x30] sm:$0xff]
          %v1105 = vld [vmem:[%s248 + $0x38] sm:$0xff]
          %v1106 = vld [vmem:[%s248 + $0x40] sm:$0xff]
          %v1107 = vld [vmem:[%s248 + $0x48] sm:$0xff]
          %v1108 = vld [vmem:[%s248 + $0x50] sm:$0xff]
          %v1109 = vld [vmem:[%s248 + $0x58] sm:$0xff]
          %v1110 = vld [vmem:[%s248 + $0x60] sm:$0xff]
          %v1111 = vld [vmem:[%s248 + $0x68] sm:$0xff]
          %v1112 = vld [vmem:[%s248 + $0x70] sm:$0xff]
          %v1113 = vld [vmem:[%s248 + $0x78] sm:$0xff]
          %v1114 = vsel %vm708, %v1098, 0.0
          %v1115 = vsel %vm708, %v1099, 0.0
          %v1116 = vsel %vm708, %v1100, 0.0
          %v1117 = vsel %vm708, %v1101, 0.0
          %v1118 = vsel %vm708, %v1102, 0.0
          %v1119 = vsel %vm708, %v1103, 0.0
          %v1120 = vsel %vm708, %v1104, 0.0
          %v1121 = vsel %vm708, %v1105, 0.0
          %v1122 = vsel %vm708, %v1106, 0.0
          %v1123 = vsel %vm708, %v1107, 0.0
          %v1124 = vsel %vm708, %v1108, 0.0
          %v1125 = vsel %vm708, %v1109, 0.0
          %v1126 = vsel %vm708, %v1110, 0.0
          %v1127 = vsel %vm708, %v1111, 0.0
          %v1128 = vsel %vm708, %v1112, 0.0
          %v1129 = vsel %vm708, %v1113, 0.0
          %1130 = vadd.xlane.f32.xlu0 %v1114
          %v1131 = vpop.xlane.xlu0 %1130
          %1132 = vadd.xlane.f32.xlu0 %v1115
          %v1133 = vpop.xlane.xlu0 %1132
          %1134 = vadd.xlane.f32.xlu0 %v1116
          %v1135 = vpop.xlane.xlu0 %1134
          %1136 = vadd.xlane.f32.xlu0 %v1117
          %v1137 = vpop.xlane.xlu0 %1136
          %1138 = vadd.xlane.f32.xlu0 %v1118
          %v1139 = vpop.xlane.xlu0 %1138
          %1140 = vadd.xlane.f32.xlu0 %v1119
          %v1141 = vpop.xlane.xlu0 %1140
          %1142 = vadd.xlane.f32.xlu0 %v1120
          %v1143 = vpop.xlane.xlu0 %1142
          %1144 = vadd.xlane.f32.xlu0 %v1121
          %v1145 = vpop.xlane.xlu0 %1144
          %1146 = vadd.xlane.f32.xlu0 %v1122
          %v1147 = vpop.xlane.xlu0 %1146
          %1148 = vadd.xlane.f32.xlu0 %v1123
          %v1149 = vpop.xlane.xlu0 %1148
          %1150 = vadd.xlane.f32.xlu0 %v1124
          %v1151 = vpop.xlane.xlu0 %1150
          %1152 = vadd.xlane.f32.xlu0 %v1125
          %v1153 = vpop.xlane.xlu0 %1152
          %1154 = vadd.xlane.f32.xlu0 %v1126
          %v1155 = vpop.xlane.xlu0 %1154
          %1156 = vadd.xlane.f32.xlu0 %v1127
          %v1157 = vpop.xlane.xlu0 %1156
          %1158 = vadd.xlane.f32.xlu0 %v1128
          %v1159 = vpop.xlane.xlu0 %1158
          %1160 = vadd.xlane.f32.xlu0 %v1129
          %v1161 = vpop.xlane.xlu0 %1160
          %v1162 = vadd.f32 %v1131, 1e-06
          %v1163 = vadd.f32 %v1133, 1e-06
          %v1164 = vadd.f32 %v1135, 1e-06
          %v1165 = vadd.f32 %v1137, 1e-06
          %v1166 = vadd.f32 %v1139, 1e-06
          %v1167 = vadd.f32 %v1141, 1e-06
          %v1168 = vadd.f32 %v1143, 1e-06
          %v1169 = vadd.f32 %v1145, 1e-06
          %v1170 = vadd.f32 %v1147, 1e-06
          %v1171 = vadd.f32 %v1149, 1e-06
          %v1172 = vadd.f32 %v1151, 1e-06
          %v1173 = vadd.f32 %v1153, 1e-06
          %v1174 = vadd.f32 %v1155, 1e-06
          %v1175 = vadd.f32 %v1157, 1e-06
          %v1176 = vadd.f32 %v1159, 1e-06
          %v1177 = vadd.f32 %v1161, 1e-06
          %v1178 = vrcp.pop %v1162
          %v1179 = vrcp.pop %v1163
          %v1180 = vrcp.pop %v1164
          %v1181 = vrcp.pop %v1165
          %v1182 = vrcp.pop %v1166
          %v1183 = vrcp.pop %v1167
          %v1184 = vrcp.pop %v1168
          %v1185 = vrcp.pop %v1169
          %v1186 = vrcp.pop %v1170
          %v1187 = vrcp.pop %v1171
          %v1188 = vrcp.pop %v1172
          %v1189 = vrcp.pop %v1173
          %v1190 = vrcp.pop %v1174
          %v1191 = vrcp.pop %v1175
          %v1192 = vrcp.pop %v1176
          %v1193 = vrcp.pop %v1177
          %v1194 = vmul.f32 %v1098, %v1178
          %v1195 = vmul.f32 %v1099, %v1179
          %v1196 = vmul.f32 %v1100, %v1180
          %v1197 = vmul.f32 %v1101, %v1181
          %v1198 = vmul.f32 %v1102, %v1182
          %v1199 = vmul.f32 %v1103, %v1183
          %v1200 = vmul.f32 %v1104, %v1184
          %v1201 = vmul.f32 %v1105, %v1185
          %v1202 = vmul.f32 %v1106, %v1186
          %v1203 = vmul.f32 %v1107, %v1187
          %v1204 = vmul.f32 %v1108, %v1188
          %v1205 = vmul.f32 %v1109, %v1189
          %v1206 = vmul.f32 %v1110, %v1190
          %v1207 = vmul.f32 %v1111, %v1191
          %v1208 = vmul.f32 %v1112, %v1192
          %v1209 = vmul.f32 %v1113, %v1193
          %1210 = vst [vmem:[%s248] sm:$0xff] %v1194
          %1211 = vst [vmem:[%s248 + $0x8] sm:$0xff] %v1195
          %1212 = vst [vmem:[%s248 + $0x10] sm:$0xff] %v1196
          %1213 = vst [vmem:[%s248 + $0x18] sm:$0xff] %v1197
          %1214 = vst [vmem:[%s248 + $0x20] sm:$0xff] %v1198
          %1215 = vst [vmem:[%s248 + $0x28] sm:$0xff] %v1199
          %1216 = vst [vmem:[%s248 + $0x30] sm:$0xff] %v1200
          %1217 = vst [vmem:[%s248 + $0x38] sm:$0xff] %v1201
          %1218 = vst [vmem:[%s248 + $0x40] sm:$0xff] %v1202
          %1219 = vst [vmem:[%s248 + $0x48] sm:$0xff] %v1203
          %1220 = vst [vmem:[%s248 + $0x50] sm:$0xff] %v1204
          %1221 = vst [vmem:[%s248 + $0x58] sm:$0xff] %v1205
          %1222 = vst [vmem:[%s248 + $0x60] sm:$0xff] %v1206
          %1223 = vst [vmem:[%s248 + $0x68] sm:$0xff] %v1207
          %1224 = vst [vmem:[%s248 + $0x70] sm:$0xff] %v1208
          %1225 = vst [vmem:[%s248 + $0x78] sm:$0xff] %v1209
        $region48: #{tpu_custom_call.1} parent=35 // pred_fallthru
          _
        %s1226 = sand.u32 %s137, 1
        %s1227 = scalar_lea.sflag [#allocation4], %s1226
        %s1228 = sand.u32 %s137, 1
        %s1229 = smul.addr %s1228, 128
        %s1230 = scalar_lea.vmem [#allocation5], %s1229
        // Predicated region
        $region49: #{tpu_custom_call.1} parent=35 // pred_check
          %p1231 = pneg %p147
        $region50: #{tpu_custom_call.1} parent=35 // pred_check_branch
          %1233 = sbr.rel (%p1231) target = $region52
        $region51: #{tpu_custom_call.1} parent=35 // pred_region
          %s1234 = smul.u32 16, %s25
          %s1236 = ssub.s32 2048, 2048
          %1237 = vsyncadd %s1227, %s1236
          %s1238 = smul.addr %s1234, 128
          %s1239 = scalar_lea.hbm %s4, %s1238
          %s1240 = sshll.u32 %s1230, 4
          %s1241 = int_to_ptr.vmem [resolvable:$true] %s1240
          %1246 = dma.vmem_to_hbm [thread:$0]  %s1241, 2048, %s1239, %s1227, 128, 128, 8
        $region52: #{tpu_custom_call.1} parent=35 // pred_fallthru
          _
      $region36: #{tpu_custom_call.1} parent=5 // pred_fallthru
        _
      %p1247 = scmp.le.s32.totalorder 2, %s16
      // Predicated region
      $region53: #{tpu_custom_call.1} parent=5 // pred_check
        %p1248 = pneg %p1247
      $region54: #{tpu_custom_call.1} parent=5 // pred_check_branch
        %1250 = sbr.rel (%p1248) target = $region56
      $region55: #{tpu_custom_call.1} parent=5 // pred_region
        %s1251 = ssub.s32 %s16, 2
        // Predicated region
        $region57: #{tpu_custom_call.1} parent=55 // pred_check
          %p1252 = pneg %p153
        $region58: #{tpu_custom_call.1} parent=55 // pred_check_branch
          %1254 = sbr.rel (%p1252) target = $region60
        $region59: #{tpu_custom_call.1} parent=55 // pred_region
          %s1255 = sand.u32 %s138, 1
          %s1256 = scalar_lea.sflag [#allocation4], %s1255
          %s1257 = sand.u32 %s138, 1
          %s1258 = smul.addr %s1257, 128
          %s1259 = scalar_lea.vmem [#allocation5], %s1258
          %1260 = dma.done %s1256, 2048
        $region60: #{tpu_custom_call.1} parent=55 // pred_fallthru
          _
      $region56: #{tpu_custom_call.1} parent=5 // pred_fallthru
        _
    $region6: #{tpu_custom_call.1} parent=1 // loop_footer
      %s20 = sadd.s32 1, %s16
    $region7: #{tpu_custom_call.1} parent=1 // loop_footer_branch
      %15 = sbr.rel target = $region3
    $region8: #{tpu_custom_call.1} parent=1 // loop_exit
      _
    %1261 = vsyncpa [#allocation3], 1
    %s1262 = scalar_lea.sflag [#allocation3], 1
    %1263 = vsyncpa %s1262, 1
    %1264 = vsyncpa [#allocation4], 1
    %s1265 = scalar_lea.sflag [#allocation4], 1
    %1266 = vsyncpa %s1265, 1

</llo_original>
